<compile_context>
chip_gen: v5e
topology: v5e:2x2
jax: 0.10.0
libtpu: 0.0.40
codegen_flags: <defaults>
</compile_context>

<pallas_src>
import functools
import math

import jax
import jax.numpy as jnp
from jax.experimental import pallas as pl
from jax.experimental.pallas import tpu as pltpu


_TARGET_BLOCK_BYTES = 4 * 1024 * 1024   # ~4 MiB per input block (amortizes per-step overhead)
_VMEM_LIMIT_BYTES = 48 * 1024 * 1024    # double-buffered in+out blocks + params, v7x-safe


def _sublane_granule(dtype) -> int:
    # 8 for 4-byte dtypes, 16 for bf16/f16, 32 for int8/fp8.
    return max(8, 32 // max(jnp.dtype(dtype).itemsize, 1))


def _pick_tile(total: int, unit_bytes: int, granule: int) -> int:
    """Largest tile (multiple of `granule`) whose block is ~_TARGET_BLOCK_BYTES."""
    t = _TARGET_BLOCK_BYTES // max(int(unit_bytes), 1)
    t = max(granule, (t // granule) * granule)
    return total if t >= total else t


# ---------------------------------------------------------------------------
# Kernels
# ---------------------------------------------------------------------------

def _ln_rows_kernel(x_ref, w_ref, b_ref, o_ref, *, eps, inv_c):
    # x_ref: (TR, C); normalize over the lane (last) axis.
    x = x_ref[...].astype(jnp.float32)
    # Independent sum / sum-of-squares reductions (overlap on the XLU).
    s1 = jnp.sum(x, axis=-1, keepdims=True)
    s2 = jnp.sum(x * x, axis=-1, keepdims=True)
    u = s1 * inv_c
    var = s2 * inv_c - u * u
    inv = jax.lax.rsqrt(var + eps)
    w = w_ref[...].astype(jnp.float32)
    b = b_ref[...].astype(jnp.float32)
    o_ref[...] = ((x - u) * inv * w + b).astype(o_ref.dtype)


def _ln_rows_folded_kernel(x_ref, w_ref, b_ref, seg_ref, segt_ref, o_ref, *, eps, inv_c):
    # x_ref: (TR, k*C) — each physical row packs k logical rows of C channels.
    # seg_ref: (k*C, k), segt_ref: (k, k*C) — 0/1 segment matrices; segmented
    # sums / broadcast-back run on the MXU so everything stays 128-lane dense.
    x = x_ref[...].astype(jnp.float32)
    seg = seg_ref[...]
    segt = segt_ref[...]
    s1 = jnp.dot(x, seg, preferred_element_type=jnp.float32)        # (TR, k)
    s2 = jnp.dot(x * x, seg, preferred_element_type=jnp.float32)    # (TR, k)
    u = s1 * inv_c
    var = s2 * inv_c - u * u
    inv = jax.lax.rsqrt(var + eps)
    u_b = jnp.dot(u, segt, preferred_element_type=jnp.float32)      # (TR, k*C)
    inv_b = jnp.dot(inv, segt, preferred_element_type=jnp.float32)  # (TR, k*C)
    w = w_ref[...].astype(jnp.float32)
    b = b_ref[...].astype(jnp.float32)
    o_ref[...] = ((x - u_b) * inv_b * w + b).astype(o_ref.dtype)


def _ln_cf_kernel(x_ref, w_ref, b_ref, o_ref, *, eps, inv_c):
    # x_ref: (1, C, T); normalize over the channel (sublane) axis.
    x = x_ref[0].astype(jnp.float32)              # (C, T)
    s1 = jnp.sum(x, axis=0, keepdims=True)        # (1, T)
    s2 = jnp.sum(x * x, axis=0, keepdims=True)    # (1, T)
    u = s1 * inv_c
    var = s2 * inv_c - u * u
    inv = jax.lax.rsqrt(var + eps)
    w = w_ref[...].astype(jnp.float32)            # (C, 1)
    b = b_ref[...].astype(jnp.float32)            # (C, 1)
    o_ref[0] = ((x - u) * inv * w + b).astype(o_ref.dtype)


# ---------------------------------------------------------------------------
# Wrappers
# ---------------------------------------------------------------------------

def _layer_norm_rows(x2d, weight, bias, eps):
    """LayerNorm over the last axis of a 2-D array (R, C) via Pallas."""
    R, C = x2d.shape
    itemsize = jnp.dtype(x2d.dtype).itemsize
    sub = _sublane_granule(x2d.dtype)
    eps = float(eps)
    inv_c = 1.0 / float(C)
    cost = pl.CostEstimate(
        flops=int(8 * R * C),
        transcendentals=int(R),
        bytes_accessed=int(2 * R * C * itemsize),
    )
    cparams = pltpu.CompilerParams(
        dimension_semantics=("parallel",),
        vmem_limit_bytes=_VMEM_LIMIT_BYTES,
    )

    k = 128 // C if (C < 128 and 128 % C == 0) else 1
    if k > 1 and R % k == 0:
        # Lane-dense folded path: pack k rows per 128-lane slab (free reshape).
        Rg = R // k
        kc = k * C
        xf = x2d.reshape(Rg, kc)
        wf = jnp.tile(weight.reshape(1, C), (1, k))
        bf = jnp.tile(bias.reshape(1, C), (1, k))
        seg = (jnp.arange(kc)[:, None] // C == jnp.arange(k)[None, :]).astype(jnp.float32)
        segt = seg.T
        tile_r = _pick_tile(Rg, kc * itemsize, sub)
        grid = (pl.cdiv(Rg, tile_r),)
        yf = pl.pallas_call(
            functools.partial(_ln_rows_folded_kernel, eps=eps, inv_c=inv_c),
            out_shape=jax.ShapeDtypeStruct((Rg, kc), x2d.dtype),
            grid_spec=pltpu.PrefetchScalarGridSpec(
                num_scalar_prefetch=0,
                grid=grid,
                in_specs=[
                    pl.BlockSpec((tile_r, kc), lambda i: (i, 0)),
                    pl.BlockSpec((1, kc), lambda i: (0, 0)),
                    pl.BlockSpec((1, kc), lambda i: (0, 0)),
                    pl.BlockSpec((kc, k), lambda i: (0, 0)),
                    pl.BlockSpec((k, kc), lambda i: (0, 0)),
                ],
                out_specs=pl.BlockSpec((tile_r, kc), lambda i: (i, 0)),
            ),
            compiler_params=cparams,
            cost_estimate=cost,
        )(xf, wf, bf, seg, segt)
        return yf.reshape(R, C)

    # Standard per-row path (C >= 128 or awkward C).
    tile_r = _pick_tile(R, C * itemsize, sub)
    grid = (pl.cdiv(R, tile_r),)
    return pl.pallas_call(
        functools.partial(_ln_rows_kernel, eps=eps, inv_c=inv_c),
        out_shape=jax.ShapeDtypeStruct((R, C), x2d.dtype),
        grid_spec=pltpu.PrefetchScalarGridSpec(
            num_scalar_prefetch=0,
            grid=grid,
            in_specs=[
                pl.BlockSpec((tile_r, C), lambda i: (i, 0)),
                pl.BlockSpec((1, C), lambda i: (0, 0)),
                pl.BlockSpec((1, C), lambda i: (0, 0)),
            ],
            out_specs=pl.BlockSpec((tile_r, C), lambda i: (i, 0)),
        ),
        compiler_params=cparams,
        cost_estimate=cost,
    )(x2d, weight.reshape(1, C), bias.reshape(1, C))


def _layer_norm_channels_first(x, weight, bias, eps):
    """LayerNorm over dim 1 of (B, C, H, W), fused (no transposes)."""
    B, C, H, W = x.shape
    HW = H * W
    itemsize = jnp.dtype(x.dtype).itemsize
    eps = float(eps)
    inv_c = 1.0 / float(C)

    x3 = x.reshape(B, C, HW)
    tile_hw = _pick_tile(HW, C * itemsize, 128)
    grid = (B, pl.cdiv(HW, tile_hw))
    cost = pl.CostEstimate(
        flops=int(8 * B * C * HW),
        transcendentals=int(B * HW),
        bytes_accessed=int(2 * B * C * HW * itemsize),
    )
    y3 = pl.pallas_call(
        functools.partial(_ln_cf_kernel, eps=eps, inv_c=inv_c),
        out_shape=jax.ShapeDtypeStruct((B, C, HW), x.dtype),
        grid_spec=pltpu.PrefetchScalarGridSpec(
            num_scalar_prefetch=0,
            grid=grid,
            in_specs=[
                pl.BlockSpec((1, C, tile_hw), lambda b, j: (b, 0, j)),
                pl.BlockSpec((C, 1), lambda b, j: (0, 0)),
                pl.BlockSpec((C, 1), lambda b, j: (0, 0)),
            ],
            out_specs=pl.BlockSpec((1, C, tile_hw), lambda b, j: (b, 0, j)),
        ),
        compiler_params=pltpu.CompilerParams(
            dimension_semantics=("parallel", "parallel"),
            vmem_limit_bytes=_VMEM_LIMIT_BYTES,
        ),
        cost_estimate=cost,
    )(x3, weight.reshape(C, 1), bias.reshape(C, 1))
    return y3.reshape(B, C, H, W)


def layer_norm(x, weight, bias, eps=1e-6, data_format="channels_last"):
    """Matches modeling/echomamba.py::LayerNorm.forward semantics."""
    if data_format == "channels_last":
        C = x.shape[-1]
        lead = x.shape[:-1]
        rows = int(math.prod(lead)) if lead else 1
        y2d = _layer_norm_rows(x.reshape(rows, C), weight, bias, eps)
        return y2d.reshape(x.shape)
    elif data_format == "channels_first":
        return _layer_norm_channels_first(x, weight, bias, eps)
    else:
        raise NotImplementedError(data_format)


# ---------------------------------------------------------------------------
# Reference + self-test
# ---------------------------------------------------------------------------

def _ref_layer_norm(x, weight, bias, eps, data_format):
    if data_format == "channels_last":
        u = jnp.mean(x, axis=-1, keepdims=True)
        s = jnp.mean((x - u) ** 2, axis=-1, keepdims=True)
        return (x - u) / jnp.sqrt(s + eps) * weight + bias
    else:
        u = jnp.mean(x, axis=1, keepdims=True)
        s = jnp.mean((x - u) ** 2, axis=1, keepdims=True)
        xn = (x - u) / jnp.sqrt(s + eps)
        return weight[None, :, None, None] * xn + bias[None, :, None, None]


if __name__ == "__main__":
    key = jax.random.PRNGKey(0)
    k1, k2, k3 = jax.random.split(key, 3)

    # channels_last (folded lane-dense path): x (B, H, W, C) with C = 32.
    B, H, W, C_last = 2, 8, 8, 32
    x_last = jax.random.normal(k1, (B, H, W, C_last), dtype=jnp.float32)
    w_last = jnp.ones((C_last,), jnp.float32) + 0.01 * jnp.arange(C_last, dtype=jnp.float32)
    b_last = 0.001 * jnp.arange(C_last, dtype=jnp.float32)
    y_last = layer_norm(x_last, w_last, b_last, eps=1e-6, data_format="channels_last")
    jax.block_until_ready(y_last)
    ref_last = _ref_layer_norm(x_last, w_last, b_last, 1e-6, "channels_last")
    assert jnp.allclose(y_last, ref_last, atol=1e-4, rtol=1e-4)

    # channels_first (fused sublane-reduction path): x (B, C, H, W) with C = 4.
    B2, C_first, H2, W2 = 2, 4, 16, 16
    x_first = jax.random.normal(k2, (B2, C_first, H2, W2), dtype=jnp.float32)
    w_first = jnp.ones((C_first,), jnp.float32) + 0.1 * jnp.arange(C_first, dtype=jnp.float32)
    b_first = 0.01 * jnp.arange(C_first, dtype=jnp.float32)
    y_first = layer_norm(x_first, w_first, b_first, eps=1e-6, data_format="channels_first")
    jax.block_until_ready(y_first)
    ref_first = _ref_layer_norm(x_first, w_first, b_first, 1e-6, "channels_first")
    assert jnp.allclose(y_first, ref_first, atol=1e-4, rtol=1e-4)

    # channels_last (standard per-row path, C that does not divide 128).
    C_big = 160
    x_big = jax.random.normal(k3, (2, 8, C_big), dtype=jnp.float32)
    w_big = jnp.ones((C_big,), jnp.float32) + 0.01 * jnp.arange(C_big, dtype=jnp.float32)
    b_big = 0.001 * jnp.arange(C_big, dtype=jnp.float32)
    y_big = layer_norm(x_big, w_big, b_big, eps=1e-6, data_format="channels_last")
    jax.block_until_ready(y_big)
    ref_big = _ref_layer_norm(x_big, w_big, b_big, 1e-6, "channels_last")
    assert jnp.allclose(y_big, ref_big, atol=1e-4, rtol=1e-4)

    print("KERNEL_OK")
</pallas_src>

<mosaic_0001>
module attributes {stable_mosaic.version = 11 : i64} {
  func.func @_ln_rows_folded_kernel(%arg0: i32, %arg1: memref<32x128xf32, #tpu.memory_space<vmem>>, %arg2: memref<1x128xf32, #tpu.memory_space<vmem>>, %arg3: memref<1x128xf32, #tpu.memory_space<vmem>>, %arg4: memref<128x4xf32, #tpu.memory_space<vmem>>, %arg5: memref<4x128xf32, #tpu.memory_space<vmem>>, %arg6: memref<32x128xf32, #tpu.memory_space<vmem>>) attributes {dimension_semantics = [#tpu.dimension_semantics<parallel>], iteration_bounds = array<i64: 1>, scalar_prefetch = 0 : i64, scratch_operands = 0 : i64, tpu.core_type = #tpu.core_type<tc>, window_params = [{transform_indices = @transform_0, window_bounds = array<i64: 32, 128>}, {pipeline_mode = #tpu.pipeline_mode<synchronous>, transform_indices = @transform_1, window_bounds = array<i64: 1, 128>}, {pipeline_mode = #tpu.pipeline_mode<synchronous>, transform_indices = @transform_2, window_bounds = array<i64: 1, 128>}, {pipeline_mode = #tpu.pipeline_mode<synchronous>, transform_indices = @transform_3, window_bounds = array<i64: 128, 4>}, {pipeline_mode = #tpu.pipeline_mode<synchronous>, transform_indices = @transform_4, window_bounds = array<i64: 4, 128>}, {transform_indices = @transform_5, window_bounds = array<i64: 32, 128>}]} {
    %c0 = arith.constant 0 : index
    %c0_0 = arith.constant 0 : index
    %0 = vector.load %arg1[%c0, %c0_0] : memref<32x128xf32, #tpu.memory_space<vmem>>, vector<32x128xf32>
    %c0_1 = arith.constant 0 : index
    %c0_2 = arith.constant 0 : index
    %1 = vector.load %arg4[%c0_1, %c0_2] : memref<128x4xf32, #tpu.memory_space<vmem>>, vector<128x4xf32>
    %c0_3 = arith.constant 0 : index
    %c0_4 = arith.constant 0 : index
    %2 = vector.load %arg5[%c0_3, %c0_4] : memref<4x128xf32, #tpu.memory_space<vmem>>, vector<4x128xf32>
    %cst = arith.constant dense<0.000000e+00> : vector<32x4xf32>
    %3 = tpu.matmul %0, %1, %cst {dimension_numbers = #tpu.dot_dimension_numbers<[1], [0], [0], [1], [0, 0, 1, 1], [], []>} : vector<32x128xf32>, vector<128x4xf32>, vector<32x4xf32> -> vector<32x4xf32>
    %4 = arith.mulf %0, %0 : vector<32x128xf32>
    %cst_5 = arith.constant dense<0.000000e+00> : vector<32x4xf32>
    %5 = tpu.matmul %4, %1, %cst_5 {dimension_numbers = #tpu.dot_dimension_numbers<[1], [0], [0], [1], [0, 0, 1, 1], [], []>} : vector<32x128xf32>, vector<128x4xf32>, vector<32x4xf32> -> vector<32x4xf32>
    %cst_6 = arith.constant 3.125000e-02 : f32
    %6 = vector.broadcast %cst_6 : f32 to vector<32x4xf32>
    %7 = arith.mulf %3, %6 : vector<32x4xf32>
    %cst_7 = arith.constant 3.125000e-02 : f32
    %8 = vector.broadcast %cst_7 : f32 to vector<32x4xf32>
    %9 = arith.mulf %5, %8 : vector<32x4xf32>
    %10 = arith.mulf %7, %7 : vector<32x4xf32>
    %11 = arith.subf %9, %10 : vector<32x4xf32>
    %cst_8 = arith.constant 9.99999997E-7 : f32
    %12 = vector.broadcast %cst_8 : f32 to vector<32x4xf32>
    %13 = arith.addf %11, %12 : vector<32x4xf32>
    %14 = math.rsqrt %13 : vector<32x4xf32>
    %cst_9 = arith.constant dense<0.000000e+00> : vector<32x128xf32>
    %15 = tpu.matmul %7, %2, %cst_9 {dimension_numbers = #tpu.dot_dimension_numbers<[1], [0], [0], [1], [0, 0, 1, 1], [], []>} : vector<32x4xf32>, vector<4x128xf32>, vector<32x128xf32> -> vector<32x128xf32>
    %cst_10 = arith.constant dense<0.000000e+00> : vector<32x128xf32>
    %16 = tpu.matmul %14, %2, %cst_10 {dimension_numbers = #tpu.dot_dimension_numbers<[1], [0], [0], [1], [0, 0, 1, 1], [], []>} : vector<32x4xf32>, vector<4x128xf32>, vector<32x128xf32> -> vector<32x128xf32>
    %c0_11 = arith.constant 0 : index
    %c0_12 = arith.constant 0 : index
    %17 = vector.load %arg2[%c0_11, %c0_12] : memref<1x128xf32, #tpu.memory_space<vmem>>, vector<1x128xf32>
    %c0_13 = arith.constant 0 : index
    %c0_14 = arith.constant 0 : index
    %18 = vector.load %arg3[%c0_13, %c0_14] : memref<1x128xf32, #tpu.memory_space<vmem>>, vector<1x128xf32>
    %19 = arith.subf %0, %15 : vector<32x128xf32>
    %20 = arith.mulf %19, %16 : vector<32x128xf32>
    %21 = vector.broadcast %17 : vector<1x128xf32> to vector<32x128xf32>
    %22 = arith.mulf %20, %21 : vector<32x128xf32>
    %23 = vector.broadcast %18 : vector<1x128xf32> to vector<32x128xf32>
    %24 = arith.addf %22, %23 : vector<32x128xf32>
    %c0_15 = arith.constant 0 : index
    %c0_16 = arith.constant 0 : index
    %25 = vector.load %arg6[%c0_15, %c0_16] : memref<32x128xf32, #tpu.memory_space<vmem>>, vector<32x128xf32>
    tpu.vector_store %arg6[%c0_15, %c0_16], %24 {strides = array<i32>} : memref<32x128xf32, #tpu.memory_space<vmem>>, vector<32x128xf32>,
    return
  }
  func.func @transform_0(%arg0: i32) -> (i32, i32) {
    %c0_i32 = arith.constant 0 : i32
    %c0_i32_0 = arith.constant 0 : i32
    return %arg0, %c0_i32 : i32, i32
  }
  func.func @transform_1(%arg0: i32) -> (i32, i32) {
    %c0_i32 = arith.constant 0 : i32
    %c0_i32_0 = arith.constant 0 : i32
    %c0_i32_1 = arith.constant 0 : i32
    return %c0_i32, %c0_i32_0 : i32, i32
  }
  func.func @transform_2(%arg0: i32) -> (i32, i32) {
    %c0_i32 = arith.constant 0 : i32
    %c0_i32_0 = arith.constant 0 : i32
    %c0_i32_1 = arith.constant 0 : i32
    return %c0_i32, %c0_i32_0 : i32, i32
  }
  func.func @transform_3(%arg0: i32) -> (i32, i32) {
    %c0_i32 = arith.constant 0 : i32
    %c0_i32_0 = arith.constant 0 : i32
    %c0_i32_1 = arith.constant 0 : i32
    return %c0_i32, %c0_i32_0 : i32, i32
  }
  func.func @transform_4(%arg0: i32) -> (i32, i32) {
    %c0_i32 = arith.constant 0 : i32
    %c0_i32_0 = arith.constant 0 : i32
    %c0_i32_1 = arith.constant 0 : i32
    return %c0_i32, %c0_i32_0 : i32, i32
  }
  func.func @transform_5(%arg0: i32) -> (i32, i32) {
    %c0_i32 = arith.constant 0 : i32
    %c0_i32_0 = arith.constant 0 : i32
    return %arg0, %c0_i32 : i32, i32
  }
}

</mosaic_0001>

<llo_original>
// kernel: tpu_custom_call.1
$region0: #{tpu_custom_call.1}
  #allocation0 [shape = 'u32[]', space=smem, size = 0x4, offset = 0x4, fixed_abs, tag = 'smem constant byte address 0x4 - core index']
  #allocation1 [shape = 'u32[72,128]{1,0:T(1,128)}', space=vmem, size = 0x9000, scoped, tag = 'internal scratch']
  %s0 = inlined_call_operand.vmem [shape: f32[32,128], index: 0, kind: input, shape index: {}]
  %s1 = inlined_call_operand.vmem [shape: f32[1,128], index: 1, kind: input, shape index: {}]
  %s2 = inlined_call_operand.vmem [shape: f32[1,128], index: 2, kind: input, shape index: {}]
  %s3 = inlined_call_operand.vmem [shape: f32[128,4], index: 3, kind: input, shape index: {}]
  %s4 = inlined_call_operand.vmem [shape: f32[4,128], index: 4, kind: input, shape index: {}]
  %s5 = inlined_call_operand.hbm [shape: f32[32,128], index: 5, kind: output, shape index: {}]
  %s6 = sld [smem:[#allocation0]]
  $region30: #{tpu_custom_call.1} parent=0
    _
  %s8 = ssub.s32 1, %s6
  %s9 = scalar_select 0, %s8, %s6
  $region1: #{tpu_custom_call.1} parent=0
    #allocation2 [shape = 'u8[16384]{0}', space=vmem, size = 0x4000, scoped, tag = 'output window, operand 0, single buffered']
    #allocation3 [shape = 's32[1]{0}', space=sflag, size = 0x4, scoped, tag = 'scoped memory for tpu_custom_call.1']
    %10 = vsyncpa [#allocation3], 0
    // Predicated region
    $region2: #{tpu_custom_call.1} parent=1 // pred_check
      _
    $region3: #{tpu_custom_call.1} parent=1 // pred_check_branch
      %12 = sbr.rel (0) target = $region5
    $region4: #{tpu_custom_call.1} parent=1 // pred_region
      _
    $region5: #{tpu_custom_call.1} parent=1 // pred_fallthru
      _
    // Predicated region
    $region6: #{tpu_custom_call.1} parent=1 // pred_check
      _
    $region7: #{tpu_custom_call.1} parent=1 // pred_check_branch
      %14 = sbr.rel (0) target = $region9
    $region8: #{tpu_custom_call.1} parent=1 // pred_region
      _
    $region9: #{tpu_custom_call.1} parent=1 // pred_fallthru
      _
    // Predicated region
    $region10: #{tpu_custom_call.1} parent=1 // pred_check
      _
    $region11: #{tpu_custom_call.1} parent=1 // pred_check_branch
      %16 = sbr.rel (0) target = $region13
    $region12: #{tpu_custom_call.1} parent=1 // pred_region
      _
    $region13: #{tpu_custom_call.1} parent=1 // pred_fallthru
      _
    // Predicated region
    $region14: #{tpu_custom_call.1} parent=1 // pred_check
      _
    $region15: #{tpu_custom_call.1} parent=1 // pred_check_branch
      %18 = sbr.rel (0) target = $region17
    $region16: #{tpu_custom_call.1} parent=1 // pred_region
      _
    $region17: #{tpu_custom_call.1} parent=1 // pred_fallthru
      _
    // Predicated region
    $region18: #{tpu_custom_call.1} parent=1 // pred_check
      _
    $region19: #{tpu_custom_call.1} parent=1 // pred_check_branch
      %20 = sbr.rel (0) target = $region21
    $region20: #{tpu_custom_call.1} parent=1 // pred_region
      _
    $region21: #{tpu_custom_call.1} parent=1 // pred_fallthru
      _
    %v21 = vld [vmem:[%s0] sm:$0xff]
    %v22 = vld [vmem:[%s0 + $0x8] sm:$0xff]
    %v23 = vld [vmem:[%s0 + $0x10] sm:$0xff]
    %v24 = vld [vmem:[%s0 + $0x18] sm:$0xff]
    %v25 = vld [vmem:[%s3] sm:$0xff]
    %v26 = vld [vmem:[%s3 + $0x8] sm:$0xff]
    %v27 = vld [vmem:[%s3 + $0x10] sm:$0xff]
    %v28 = vld [vmem:[%s3 + $0x18] sm:$0xff]
    %v29 = vld [vmem:[%s3 + $0x20] sm:$0xff]
    %v30 = vld [vmem:[%s3 + $0x28] sm:$0xff]
    %v31 = vld [vmem:[%s3 + $0x30] sm:$0xff]
    %v32 = vld [vmem:[%s3 + $0x38] sm:$0xff]
    %v33 = vld [vmem:[%s3 + $0x40] sm:$0xff]
    %v34 = vld [vmem:[%s3 + $0x48] sm:$0xff]
    %v35 = vld [vmem:[%s3 + $0x50] sm:$0xff]
    %v36 = vld [vmem:[%s3 + $0x58] sm:$0xff]
    %v37 = vld [vmem:[%s3 + $0x60] sm:$0xff]
    %v38 = vld [vmem:[%s3 + $0x68] sm:$0xff]
    %v39 = vld [vmem:[%s3 + $0x70] sm:$0xff]
    %v40 = vld [vmem:[%s3 + $0x78] sm:$0xff]
    %v41 = vld [vmem:[%s4] sm:$0xf]
    %42 = vmatpush.msra.mxu0 %v40
    %43 = vmatpush.msra.mxu0 %v39
    %44 = vmatpush.msra.mxu0 %v38
    %45 = vmatpush.msra.mxu0 %v37
    %46 = vmatpush.msra.mxu0 %v36
    %47 = vmatpush.msra.mxu0 %v35
    %48 = vmatpush.msra.mxu0 %v34
    %49 = vmatpush.msra.mxu0 %v33
    %50 = vmatpush.msra.mxu0 %v32
    %51 = vmatpush.msra.mxu0 %v31
    %52 = vmatpush.msra.mxu0 %v30
    %53 = vmatpush.msra.mxu0 %v29
    %54 = vmatpush.msra.mxu0 %v28
    %55 = vmatpush.msra.mxu0 %v27
    %56 = vmatpush.msra.mxu0 %v26
    %57 = vmatpush.msra.mxu0 %v25
    %58 = vmatmul.f32.gmra.mxu0 %v21
    %v59 = vpop.f32.mrf.mxu0
    %v60 = vadd.f32 0.0, %v59
    %61 = vmatmul.f32.gmra.mxu0 %v22
    %v62 = vpop.f32.mrf.mxu0
    %v63 = vadd.f32 0.0, %v62
    %64 = vmatmul.f32.gmra.mxu0 %v23
    %v65 = vpop.f32.mrf.mxu0
    %v66 = vadd.f32 0.0, %v65
    %67 = vmatmul.f32.gmra.mxu0 %v24
    %v68 = vpop.f32.mrf.mxu0
    %v69 = vadd.f32 0.0, %v68
    %70 = vdwg.mxu0
    %v71 = vmul.f32 %v21, %v21
    %v72 = vmul.f32 %v22, %v22
    %v73 = vmul.f32 %v23, %v23
    %v74 = vmul.f32 %v24, %v24
    %75 = vmatpush.msra.mxu0 %v40
    %76 = vmatpush.msra.mxu0 %v39
    %77 = vmatpush.msra.mxu0 %v38
    %78 = vmatpush.msra.mxu0 %v37
    %79 = vmatpush.msra.mxu0 %v36
    %80 = vmatpush.msra.mxu0 %v35
    %81 = vmatpush.msra.mxu0 %v34
    %82 = vmatpush.msra.mxu0 %v33
    %83 = vmatpush.msra.mxu0 %v32
    %84 = vmatpush.msra.mxu0 %v31
    %85 = vmatpush.msra.mxu0 %v30
    %86 = vmatpush.msra.mxu0 %v29
    %87 = vmatpush.msra.mxu0 %v28
    %88 = vmatpush.msra.mxu0 %v27
    %89 = vmatpush.msra.mxu0 %v26
    %90 = vmatpush.msra.mxu0 %v25
    %91 = vmatmul.f32.gmra.mxu0 %v71
    %v92 = vpop.f32.mrf.mxu0
    %v93 = vadd.f32 0.0, %v92
    %94 = vmatmul.f32.gmra.mxu0 %v72
    %v95 = vpop.f32.mrf.mxu0
    %v96 = vadd.f32 0.0, %v95
    %97 = vmatmul.f32.gmra.mxu0 %v73
    %v98 = vpop.f32.mrf.mxu0
    %v99 = vadd.f32 0.0, %v98
    %100 = vmatmul.f32.gmra.mxu0 %v74
    %v101 = vpop.f32.mrf.mxu0
    %v102 = vadd.f32 0.0, %v101
    %103 = vdwg.mxu0
    %v104 = vmul.f32 %v60, 0.03125
    %v105 = vmul.f32 %v63, 0.03125
    %v106 = vmul.f32 %v66, 0.03125
    %v107 = vmul.f32 %v69, 0.03125
    %v108 = vmul.f32 %v93, 0.03125
    %v109 = vmul.f32 %v96, 0.03125
    %v110 = vmul.f32 %v99, 0.03125
    %v111 = vmul.f32 %v102, 0.03125
    %v112 = vmul.f32 %v104, %v104
    %v113 = vmul.f32 %v105, %v105
    %v114 = vmul.f32 %v106, %v106
    %v115 = vmul.f32 %v107, %v107
    %v116 = vsub.f32 %v108, %v112
    %v117 = vsub.f32 %v109, %v113
    %v118 = vsub.f32 %v110, %v114
    %v119 = vsub.f32 %v111, %v115
    %v120 = vadd.f32 %v116, 1e-06
    %v121 = vadd.f32 %v117, 1e-06
    %v122 = vadd.f32 %v118, 1e-06
    %v123 = vadd.f32 %v119, 1e-06
    %v124 = vrsqrt.pop %v120
    %v125 = vmul.f32 %v124, %v120
    %v126 = vmul.f32 %v125, %v124
    %v127 = vmul.f32 0.5, %v126
    %v128 = vsub.f32 1.5, %v127
    %v129 = vmul.f32 %v124, %v128
    %vm130 = vweird.f32 %v120
    %vm131 = vweird.f32 %v124
    %vm132 = vmor %vm130, %vm131
    %v133 = vsel %vm132, %v124, %v129
    %v134 = vrsqrt.pop %v121
    %v135 = vmul.f32 %v134, %v121
    %v136 = vmul.f32 %v135, %v134
    %v137 = vmul.f32 0.5, %v136
    %v138 = vsub.f32 1.5, %v137
    %v139 = vmul.f32 %v134, %v138
    %vm140 = vweird.f32 %v121
    %vm141 = vweird.f32 %v134
    %vm142 = vmor %vm140, %vm141
    %v143 = vsel %vm142, %v134, %v139
    %v144 = vrsqrt.pop %v122
    %v145 = vmul.f32 %v144, %v122
    %v146 = vmul.f32 %v145, %v144
    %v147 = vmul.f32 0.5, %v146
    %v148 = vsub.f32 1.5, %v147
    %v149 = vmul.f32 %v144, %v148
    %vm150 = vweird.f32 %v122
    %vm151 = vweird.f32 %v144
    %vm152 = vmor %vm150, %vm151
    %v153 = vsel %vm152, %v144, %v149
    %v154 = vrsqrt.pop %v123
    %v155 = vmul.f32 %v154, %v123
    %v156 = vmul.f32 %v155, %v154
    %v157 = vmul.f32 0.5, %v156
    %v158 = vsub.f32 1.5, %v157
    %v159 = vmul.f32 %v154, %v158
    %vm160 = vweird.f32 %v123
    %vm161 = vweird.f32 %v154
    %vm162 = vmor %vm160, %vm161
    %v163 = vsel %vm162, %v154, %v159
    %vm164 = vcmask 31744
    %v166 = vsel %vm164, %v104, 0
    %v169 = vsel %vm164, %v105, 0
    %v172 = vsel %vm164, %v106, 0
    %v175 = vsel %vm164, %v107, 0
    %vm177 = vcmask 1043456
    %v179 = vsel %vm177, %v41, 0
    %181 = vmatpush.msra.mxu0 0.0
    %182 = vmatpush.msra.mxu0 0.0
    %183 = vmatpush.msra.mxu0 0.0
    %184 = vmatpush.msra.mxu0 0.0
    %185 = vmatpush.msra.mxu0 0.0
    %186 = vmatpush.msra.mxu0 0.0
    %187 = vmatpush.msra.mxu0 0.0
    %188 = vmatpush.msra.mxu0 0.0
    %189 = vmatpush.msra.mxu0 0.0
    %190 = vmatpush.msra.mxu0 0.0
    %191 = vmatpush.msra.mxu0 0.0
    %192 = vmatpush.msra.mxu0 0.0
    %193 = vmatpush.msra.mxu0 0.0
    %194 = vmatpush.msra.mxu0 0.0
    %195 = vmatpush.msra.mxu0 0.0
    %196 = vmatpush.msra.mxu0 %v179
    %197 = vmatmul.f32.gmra.mxu0 %v166
    %v198 = vpop.f32.mrf.mxu0
    %v199 = vadd.f32 0.0, %v198
    %200 = vmatmul.f32.gmra.mxu0 %v169
    %v201 = vpop.f32.mrf.mxu0
    %v202 = vadd.f32 0.0, %v201
    %203 = vmatmul.f32.gmra.mxu0 %v172
    %v204 = vpop.f32.mrf.mxu0
    %v205 = vadd.f32 0.0, %v204
    %206 = vmatmul.f32.gmra.mxu0 %v175
    %v207 = vpop.f32.mrf.mxu0
    %v208 = vadd.f32 0.0, %v207
    %209 = vdwg.mxu0
    %v211 = vsel %vm164, %v133, 0
    %v214 = vsel %vm164, %v143, 0
    %v217 = vsel %vm164, %v153, 0
    %v220 = vsel %vm164, %v163, 0
    %222 = vmatpush.msra.mxu0 0.0
    %223 = vmatpush.msra.mxu0 0.0
    %224 = vmatpush.msra.mxu0 0.0
    %225 = vmatpush.msra.mxu0 0.0
    %226 = vmatpush.msra.mxu0 0.0
    %227 = vmatpush.msra.mxu0 0.0
    %228 = vmatpush.msra.mxu0 0.0
    %229 = vmatpush.msra.mxu0 0.0
    %230 = vmatpush.msra.mxu0 0.0
    %231 = vmatpush.msra.mxu0 0.0
    %232 = vmatpush.msra.mxu0 0.0
    %233 = vmatpush.msra.mxu0 0.0
    %234 = vmatpush.msra.mxu0 0.0
    %235 = vmatpush.msra.mxu0 0.0
    %236 = vmatpush.msra.mxu0 0.0
    %237 = vmatpush.msra.mxu0 %v179
    %238 = vmatmul.f32.gmra.mxu0 %v211
    %v239 = vpop.f32.mrf.mxu0
    %v240 = vadd.f32 0.0, %v239
    %241 = vmatmul.f32.gmra.mxu0 %v214
    %v242 = vpop.f32.mrf.mxu0
    %v243 = vadd.f32 0.0, %v242
    %244 = vmatmul.f32.gmra.mxu0 %v217
    %v245 = vpop.f32.mrf.mxu0
    %v246 = vadd.f32 0.0, %v245
    %247 = vmatmul.f32.gmra.mxu0 %v220
    %v248 = vpop.f32.mrf.mxu0
    %v249 = vadd.f32 0.0, %v248
    %250 = vdwg.mxu0
    %v251 = vld [vmem:[%s1] sm:$0x1]
    %v252 = vld [vmem:[%s2] sm:$0x1]
    %v253 = vsub.f32 %v21, %v199
    %v254 = vsub.f32 %v22, %v202
    %v255 = vsub.f32 %v23, %v205
    %v256 = vsub.f32 %v24, %v208
    %v257 = vmul.f32 %v253, %v240
    %v258 = vmul.f32 %v254, %v243
    %v259 = vmul.f32 %v255, %v246
    %v260 = vmul.f32 %v256, %v249
    %v262 = vperm.slane %v251, 0
    %v264 = vmul.f32 %v257, %v262
    %v265 = vmul.f32 %v258, %v262
    %v266 = vmul.f32 %v259, %v262
    %v267 = vmul.f32 %v260, %v262
    %v269 = vperm.slane %v252, 0
    %v271 = vadd.f32 %v264, %v269
    %v272 = vadd.f32 %v265, %v269
    %v273 = vadd.f32 %v266, %v269
    %v274 = vadd.f32 %v267, %v269
    %275 = vst [vmem:[#allocation2] sm:$0xff] %v271
    %276 = vst [vmem:[#allocation2 + $0x8] sm:$0xff] %v272
    %277 = vst [vmem:[#allocation2 + $0x10] sm:$0xff] %v273
    %278 = vst [vmem:[#allocation2 + $0x18] sm:$0xff] %v274
    // Predicated region
    $region22: #{tpu_custom_call.1} parent=1 // pred_check
      _
    $region23: #{tpu_custom_call.1} parent=1 // pred_check_branch
      %280 = sbr.rel (0) target = $region25
    $region24: #{tpu_custom_call.1} parent=1 // pred_region
      %282 = vsyncadd [#allocation3], 0
      %s283 = sshll.u32 [#allocation2], 4
      %s284 = int_to_ptr.vmem [resolvable:$true] %s283
      %s285 = sshll.u32 %s5, 4
      %s286 = int_to_ptr.hbm [resolvable:$true] %s285
      %291 = dma.vmem_to_hbm [thread:$0]  %s284, 512, %s286, [#allocation3], 128, 128, 8
    $region25: #{tpu_custom_call.1} parent=1 // pred_fallthru
      _
    // Predicated region
    $region26: #{tpu_custom_call.1} parent=1 // pred_check
      _
    $region27: #{tpu_custom_call.1} parent=1 // pred_check_branch
      %293 = sbr.rel (0) target = $region29
    $region28: #{tpu_custom_call.1} parent=1 // pred_region
      %295 = dma.done [#allocation3], 512
    $region29: #{tpu_custom_call.1} parent=1 // pred_fallthru
      _
    %296 = vsyncpa [#allocation3], 1

</llo_original>
